<compile_context>
chip_gen: v7x
topology: tpu7x:2x2x1
jax: 0.10.0
libtpu: 0.0.40
codegen_flags: <defaults>
</compile_context>

<pallas_src>
import functools

import jax
import jax.numpy as jnp
from jax.experimental import pallas as pl
from jax.experimental.pallas import tpu as pltpu


def build_layer_dims(input_features, output_features, scale_factor):
    """Mirror Network.__init__'s layer construction logic."""
    dims = []
    in_f = input_features
    while in_f > output_features * scale_factor:
        out_f = max(int(in_f / scale_factor), output_features * scale_factor)
        dims.append((in_f, out_f))
        in_f = out_f
    dims.append((in_f, output_features))  # final Linear (no ReLU)
    return dims


def _round_up(n, m):
    return ((n + m - 1) // m) * m


def pack_params(weights, biases, compute_dtype=jnp.bfloat16):
    """Per-layer zero-padded parameter packing.  Call ONCE, outside jit/hot loop.

    weights[i]: (in_i, out_i) f32; biases[i]: (1, out_i) or (out_i,) f32.
    Layer 0 keeps its natural contraction width (x is read unpadded); every
    other contraction width equals the previous layer's 128-padded output.
    """
    packed_w, packed_b = [], []
    for li, (w, b) in enumerate(zip(weights, biases)):
        k, n = w.shape
        k_pad = k if li == 0 else _round_up(k, 128)
        n_pad = _round_up(n, 128)
        wp = jnp.zeros((k_pad, n_pad), dtype=compute_dtype)
        wp = wp.at[:k, :n].set(w.astype(compute_dtype))
        bp = jnp.zeros((1, n_pad), dtype=jnp.float32)
        bp = bp.at[0, :n].set(b.reshape(-1).astype(jnp.float32))
        packed_w.append(wp)
        packed_b.append(bp)
    return packed_w, packed_b


def _make_mlp_kernel(num_layers, compute_dtype):
    """Fused MLP kernel. Refs: (x, w_0..w_{L-1}, b_0..b_{L-1}, out)."""

    def kernel(*refs):
        x_ref = refs[0]
        w_refs = refs[1:1 + num_layers]
        b_refs = refs[1 + num_layers:1 + 2 * num_layers]
        o_ref = refs[1 + 2 * num_layers]

        h = x_ref[...].astype(compute_dtype)          # f32 -> bf16 cast in VMEM
        for li in range(num_layers):                  # static unroll
            acc = jnp.dot(h, w_refs[li][...],         # MXU, f32 accumulate
                          preferred_element_type=jnp.float32)
            acc = acc + b_refs[li][...]               # f32 bias add (VPU)
            if li < num_layers - 1:
                h = jnp.maximum(acc, 0.0).astype(compute_dtype)   # ReLU, re-pack bf16
            else:
                h = acc                               # final pre-activation, f32
        # sigmoid(x) = 0.5 * (tanh(x/2) + 1): single EUP op, numerically stable.
        o_ref[...] = 0.5 * (jnp.tanh(0.5 * h) + 1.0)

    return kernel


def _pick_batch_tile(batch, block_b):
    """Batch tile: large (amortize ~600-cycle step overhead), >=2 tiles when
    possible (v7x dual TensorCore), multiple of 16 for bf16 sublane packing."""
    if batch <= block_b:
        bb = batch
    elif batch <= 2 * block_b:
        bb = (batch + 1) // 2          # split into two parallel tiles
    else:
        bb = block_b
    mult = 16 if batch >= 16 else 8
    return _round_up(bb, mult)


def mlp_forward(x, packed_weights, packed_biases, *, out_features,
                block_b=1024, compute_dtype=jnp.bfloat16):
    """Fused MLP forward on pre-packed (per-layer padded) parameters."""
    num_layers = len(packed_weights)
    batch, in_features = x.shape
    f_out = packed_weights[-1].shape[1]          # 128-padded output width

    bb = _pick_batch_tile(batch, block_b)
    padded_batch = _round_up(batch, bb)
    xp = x if padded_batch == batch else jnp.pad(
        x, ((0, padded_batch - batch), (0, 0)))

    kernel = _make_mlp_kernel(num_layers, compute_dtype)

    # x tile: lane dim == full array width (legal even if not 128-aligned).
    in_specs = [pl.BlockSpec((bb, in_features), lambda i: (i, 0))]
    # Resident, single-buffered parameters (constant index_map).
    in_specs += [pl.BlockSpec(w.shape, lambda i: (0, 0),
                              pipeline_mode=pl.Buffered(1))
                 for w in packed_weights]
    in_specs += [pl.BlockSpec(b.shape, lambda i: (0, 0),
                              pipeline_mode=pl.Buffered(1))
                 for b in packed_biases]

    # VMEM budget: double-buffered x/out tiles + single-buffered params, 2x headroom.
    vmem_need = 2 * bb * in_features * 4 + 2 * bb * f_out * 4
    for wp, bp in zip(packed_weights, packed_biases):
        vmem_need += wp.size * 2 + bp.size * 4
    vmem_limit = int(min(max(2 * vmem_need, 32 * 1024 * 1024), 64 * 1024 * 1024))

    out = pl.pallas_call(
        kernel,
        out_shape=jax.ShapeDtypeStruct((padded_batch, f_out), jnp.float32),
        grid_spec=pltpu.PrefetchScalarGridSpec(
            num_scalar_prefetch=0,
            grid=(padded_batch // bb,),
            in_specs=in_specs,
            out_specs=pl.BlockSpec((bb, f_out), lambda i: (i, 0)),
        ),
        compiler_params=pltpu.CompilerParams(
            dimension_semantics=("parallel",),   # shard batch tiles across TCs (v7x)
            vmem_limit_bytes=vmem_limit,
        ),
    )(xp, *packed_weights, *packed_biases)

    # Drop batch/feature padding.
    return out[:batch, :out_features]


def init_params(key, layer_dims):
    """Deterministic synthetic parameter init (weights ~ N(0, 0.1), bias ~ N(0, 0.01))."""
    weights, biases = [], []
    for (fin, fout) in layer_dims:
        key, kw, kb = jax.random.split(key, 3)
        weights.append(0.1 * jax.random.normal(kw, (fin, fout), dtype=jnp.float32))
        biases.append(0.01 * jax.random.normal(kb, (1, fout), dtype=jnp.float32))
    return weights, biases


def reference_forward(x, weights, biases, compute_dtype=jnp.float32):
    """Pure-JAX reference; compute_dtype controls matmul operand precision."""
    h = x.astype(compute_dtype)
    n = len(weights)
    for i, (w, b) in enumerate(zip(weights, biases)):
        h = jnp.dot(h, w.astype(compute_dtype),
                    preferred_element_type=jnp.float32) + b
        if i < n - 1:
            h = jnp.maximum(h, 0.0).astype(compute_dtype)
    return jax.nn.sigmoid(h)


if __name__ == "__main__":
    # Small shapes consistent with the module's constructor.
    input_features = 64
    output_features = 4
    scale_factor = 2
    batch = 8

    layer_dims = build_layer_dims(input_features, output_features, scale_factor)
    # For (64, 4, 2): [(64,32),(32,16),(16,8),(8,4)]

    key = jax.random.PRNGKey(0)
    key, kx = jax.random.split(key)
    x = jax.random.normal(kx, (batch, input_features), dtype=jnp.float32)

    weights, biases = init_params(key, layer_dims)

    # Pack / pad parameters ONCE, outside the jitted per-call path.
    packed_w, packed_b = pack_params(weights, biases)

    fwd = jax.jit(functools.partial(mlp_forward, out_features=output_features))
    out = jax.block_until_ready(fwd(x, packed_w, packed_b))

    ref_f32 = jax.block_until_ready(
        reference_forward(x, weights, biases, jnp.float32))
    ref_bf16 = jax.block_until_ready(
        reference_forward(x, weights, biases, jnp.bfloat16))

    assert out.shape == (batch, output_features)
    # Tight check vs precision-matched (bf16 matmul) reference.
    assert jnp.allclose(out, ref_bf16, atol=1e-2, rtol=1e-2), "mismatch vs bf16 reference"
    # Loose check vs full-f32 module semantics (bf16 matmul rounding only).
    assert jnp.allclose(out, ref_f32, atol=5e-2, rtol=5e-2), "mismatch vs f32 reference"

    print("KERNEL_OK")
</pallas_src>

<mosaic_0001>
module attributes {stable_mosaic.version = 11 : i64} {
  func.func @kernel(%arg0: i32, %arg1: memref<8x64xf32, #tpu.memory_space<vmem>>, %arg2: memref<64x128xbf16, #tpu.memory_space<vmem>>, %arg3: memref<128x128xbf16, #tpu.memory_space<vmem>>, %arg4: memref<128x128xbf16, #tpu.memory_space<vmem>>, %arg5: memref<128x128xbf16, #tpu.memory_space<vmem>>, %arg6: memref<1x128xf32, #tpu.memory_space<vmem>>, %arg7: memref<1x128xf32, #tpu.memory_space<vmem>>, %arg8: memref<1x128xf32, #tpu.memory_space<vmem>>, %arg9: memref<1x128xf32, #tpu.memory_space<vmem>>, %arg10: memref<8x128xf32, #tpu.memory_space<vmem>>) attributes {dimension_semantics = [#tpu.dimension_semantics<parallel>], iteration_bounds = array<i64: 1>, scalar_prefetch = 0 : i64, scratch_operands = 0 : i64, tpu.core_type = #tpu.core_type<tc>, window_params = [{transform_indices = @transform_0, window_bounds = array<i64: 8, 64>}, {pipeline_mode = #tpu.pipeline_mode<synchronous>, transform_indices = @transform_1, window_bounds = array<i64: 64, 128>}, {pipeline_mode = #tpu.pipeline_mode<synchronous>, transform_indices = @transform_2, window_bounds = array<i64: 128, 128>}, {pipeline_mode = #tpu.pipeline_mode<synchronous>, transform_indices = @transform_3, window_bounds = array<i64: 128, 128>}, {pipeline_mode = #tpu.pipeline_mode<synchronous>, transform_indices = @transform_4, window_bounds = array<i64: 128, 128>}, {pipeline_mode = #tpu.pipeline_mode<synchronous>, transform_indices = @transform_5, window_bounds = array<i64: 1, 128>}, {pipeline_mode = #tpu.pipeline_mode<synchronous>, transform_indices = @transform_6, window_bounds = array<i64: 1, 128>}, {pipeline_mode = #tpu.pipeline_mode<synchronous>, transform_indices = @transform_7, window_bounds = array<i64: 1, 128>}, {pipeline_mode = #tpu.pipeline_mode<synchronous>, transform_indices = @transform_8, window_bounds = array<i64: 1, 128>}, {transform_indices = @transform_9, window_bounds = array<i64: 8, 128>}]} {
    %c0 = arith.constant 0 : index
    %c0_0 = arith.constant 0 : index
    %0 = vector.load %arg1[%c0, %c0_0] : memref<8x64xf32, #tpu.memory_space<vmem>>, vector<8x64xf32>
    %1 = arith.truncf %0 : vector<8x64xf32> to vector<8x64xbf16>
    %c0_1 = arith.constant 0 : index
    %c0_2 = arith.constant 0 : index
    %2 = vector.load %arg2[%c0_1, %c0_2] : memref<64x128xbf16, #tpu.memory_space<vmem>>, vector<64x128xbf16>
    %cst = arith.constant dense<0.000000e+00> : vector<8x128xf32>
    %3 = tpu.matmul %1, %2, %cst {dimension_numbers = #tpu.dot_dimension_numbers<[1], [0], [0], [1], [0, 0, 1, 1], [], []>} : vector<8x64xbf16>, vector<64x128xbf16>, vector<8x128xf32> -> vector<8x128xf32>
    %c0_3 = arith.constant 0 : index
    %c0_4 = arith.constant 0 : index
    %4 = vector.load %arg6[%c0_3, %c0_4] : memref<1x128xf32, #tpu.memory_space<vmem>>, vector<1x128xf32>
    %5 = vector.broadcast %4 : vector<1x128xf32> to vector<8x128xf32>
    %6 = arith.addf %3, %5 : vector<8x128xf32>
    %cst_5 = arith.constant 0.000000e+00 : f32
    %7 = vector.broadcast %cst_5 : f32 to vector<8x128xf32>
    %8 = arith.maximumf %6, %7 : vector<8x128xf32>
    %9 = arith.truncf %8 : vector<8x128xf32> to vector<8x128xbf16>
    %c0_6 = arith.constant 0 : index
    %c0_7 = arith.constant 0 : index
    %10 = vector.load %arg3[%c0_6, %c0_7] : memref<128x128xbf16, #tpu.memory_space<vmem>>, vector<128x128xbf16>
    %cst_8 = arith.constant dense<0.000000e+00> : vector<8x128xf32>
    %11 = tpu.matmul %9, %10, %cst_8 {dimension_numbers = #tpu.dot_dimension_numbers<[1], [0], [0], [1], [0, 0, 1, 1], [], []>} : vector<8x128xbf16>, vector<128x128xbf16>, vector<8x128xf32> -> vector<8x128xf32>
    %c0_9 = arith.constant 0 : index
    %c0_10 = arith.constant 0 : index
    %12 = vector.load %arg7[%c0_9, %c0_10] : memref<1x128xf32, #tpu.memory_space<vmem>>, vector<1x128xf32>
    %13 = vector.broadcast %12 : vector<1x128xf32> to vector<8x128xf32>
    %14 = arith.addf %11, %13 : vector<8x128xf32>
    %cst_11 = arith.constant 0.000000e+00 : f32
    %15 = vector.broadcast %cst_11 : f32 to vector<8x128xf32>
    %16 = arith.maximumf %14, %15 : vector<8x128xf32>
    %17 = arith.truncf %16 : vector<8x128xf32> to vector<8x128xbf16>
    %c0_12 = arith.constant 0 : index
    %c0_13 = arith.constant 0 : index
    %18 = vector.load %arg4[%c0_12, %c0_13] : memref<128x128xbf16, #tpu.memory_space<vmem>>, vector<128x128xbf16>
    %cst_14 = arith.constant dense<0.000000e+00> : vector<8x128xf32>
    %19 = tpu.matmul %17, %18, %cst_14 {dimension_numbers = #tpu.dot_dimension_numbers<[1], [0], [0], [1], [0, 0, 1, 1], [], []>} : vector<8x128xbf16>, vector<128x128xbf16>, vector<8x128xf32> -> vector<8x128xf32>
    %c0_15 = arith.constant 0 : index
    %c0_16 = arith.constant 0 : index
    %20 = vector.load %arg8[%c0_15, %c0_16] : memref<1x128xf32, #tpu.memory_space<vmem>>, vector<1x128xf32>
    %21 = vector.broadcast %20 : vector<1x128xf32> to vector<8x128xf32>
    %22 = arith.addf %19, %21 : vector<8x128xf32>
    %cst_17 = arith.constant 0.000000e+00 : f32
    %23 = vector.broadcast %cst_17 : f32 to vector<8x128xf32>
    %24 = arith.maximumf %22, %23 : vector<8x128xf32>
    %25 = arith.truncf %24 : vector<8x128xf32> to vector<8x128xbf16>
    %c0_18 = arith.constant 0 : index
    %c0_19 = arith.constant 0 : index
    %26 = vector.load %arg5[%c0_18, %c0_19] : memref<128x128xbf16, #tpu.memory_space<vmem>>, vector<128x128xbf16>
    %cst_20 = arith.constant dense<0.000000e+00> : vector<8x128xf32>
    %27 = tpu.matmul %25, %26, %cst_20 {dimension_numbers = #tpu.dot_dimension_numbers<[1], [0], [0], [1], [0, 0, 1, 1], [], []>} : vector<8x128xbf16>, vector<128x128xbf16>, vector<8x128xf32> -> vector<8x128xf32>
    %c0_21 = arith.constant 0 : index
    %c0_22 = arith.constant 0 : index
    %28 = vector.load %arg9[%c0_21, %c0_22] : memref<1x128xf32, #tpu.memory_space<vmem>>, vector<1x128xf32>
    %29 = vector.broadcast %28 : vector<1x128xf32> to vector<8x128xf32>
    %30 = arith.addf %27, %29 : vector<8x128xf32>
    %cst_23 = arith.constant 5.000000e-01 : f32
    %31 = vector.broadcast %cst_23 : f32 to vector<8x128xf32>
    %32 = arith.mulf %31, %30 : vector<8x128xf32>
    %33 = math.tanh %32 : vector<8x128xf32>
    %cst_24 = arith.constant 1.000000e+00 : f32
    %34 = vector.broadcast %cst_24 : f32 to vector<8x128xf32>
    %35 = arith.addf %33, %34 : vector<8x128xf32>
    %cst_25 = arith.constant 5.000000e-01 : f32
    %36 = vector.broadcast %cst_25 : f32 to vector<8x128xf32>
    %37 = arith.mulf %36, %35 : vector<8x128xf32>
    %c0_26 = arith.constant 0 : index
    %c0_27 = arith.constant 0 : index
    %38 = vector.load %arg10[%c0_26, %c0_27] : memref<8x128xf32, #tpu.memory_space<vmem>>, vector<8x128xf32>
    tpu.vector_store %arg10[%c0_26, %c0_27], %37 {strides = array<i32>} : memref<8x128xf32, #tpu.memory_space<vmem>>, vector<8x128xf32>,
    return
  }
  func.func @transform_0(%arg0: i32) -> (i32, i32) {
    %c0_i32 = arith.constant 0 : i32
    %c0_i32_0 = arith.constant 0 : i32
    return %arg0, %c0_i32 : i32, i32
  }
  func.func @transform_1(%arg0: i32) -> (i32, i32) {
    %c0_i32 = arith.constant 0 : i32
    %c0_i32_0 = arith.constant 0 : i32
    %c0_i32_1 = arith.constant 0 : i32
    return %c0_i32, %c0_i32_0 : i32, i32
  }
  func.func @transform_2(%arg0: i32) -> (i32, i32) {
    %c0_i32 = arith.constant 0 : i32
    %c0_i32_0 = arith.constant 0 : i32
    %c0_i32_1 = arith.constant 0 : i32
    return %c0_i32, %c0_i32_0 : i32, i32
  }
  func.func @transform_3(%arg0: i32) -> (i32, i32) {
    %c0_i32 = arith.constant 0 : i32
    %c0_i32_0 = arith.constant 0 : i32
    %c0_i32_1 = arith.constant 0 : i32
    return %c0_i32, %c0_i32_0 : i32, i32
  }
  func.func @transform_4(%arg0: i32) -> (i32, i32) {
    %c0_i32 = arith.constant 0 : i32
    %c0_i32_0 = arith.constant 0 : i32
    %c0_i32_1 = arith.constant 0 : i32
    return %c0_i32, %c0_i32_0 : i32, i32
  }
  func.func @transform_5(%arg0: i32) -> (i32, i32) {
    %c0_i32 = arith.constant 0 : i32
    %c0_i32_0 = arith.constant 0 : i32
    %c0_i32_1 = arith.constant 0 : i32
    return %c0_i32, %c0_i32_0 : i32, i32
  }
  func.func @transform_6(%arg0: i32) -> (i32, i32) {
    %c0_i32 = arith.constant 0 : i32
    %c0_i32_0 = arith.constant 0 : i32
    %c0_i32_1 = arith.constant 0 : i32
    return %c0_i32, %c0_i32_0 : i32, i32
  }
  func.func @transform_7(%arg0: i32) -> (i32, i32) {
    %c0_i32 = arith.constant 0 : i32
    %c0_i32_0 = arith.constant 0 : i32
    %c0_i32_1 = arith.constant 0 : i32
    return %c0_i32, %c0_i32_0 : i32, i32
  }
  func.func @transform_8(%arg0: i32) -> (i32, i32) {
    %c0_i32 = arith.constant 0 : i32
    %c0_i32_0 = arith.constant 0 : i32
    %c0_i32_1 = arith.constant 0 : i32
    return %c0_i32, %c0_i32_0 : i32, i32
  }
  func.func @transform_9(%arg0: i32) -> (i32, i32) {
    %c0_i32 = arith.constant 0 : i32
    %c0_i32_0 = arith.constant 0 : i32
    return %arg0, %c0_i32 : i32, i32
  }
}

</mosaic_0001>

<llo_original>
// kernel: mlp_forward.1
$region0: #{mlp_forward.1}
  #allocation0 [shape = 'u32[]', space=smem, size = 0x4, offset = 0x4, fixed_abs, tag = 'smem constant byte address 0x4 - core index']
  #allocation1 [shape = 'u32[144,128]{1,0:T(1,128)}', space=vmem, size = 0x12000, scoped, tag = 'internal scratch']
  %s0 = inlined_call_operand.hbm [shape: f32[8,64], index: 0, kind: input, shape index: {}]
  %s1 = inlined_call_operand.hbm [shape: bf16[64,128], index: 1, kind: input, shape index: {}]
  %s2 = inlined_call_operand.hbm [shape: bf16[128,128], index: 2, kind: input, shape index: {}]
  %s3 = inlined_call_operand.hbm [shape: bf16[128,128], index: 3, kind: input, shape index: {}]
  %s4 = inlined_call_operand.hbm [shape: bf16[128,128], index: 4, kind: input, shape index: {}]
  %s5 = inlined_call_operand.vmem [shape: f32[1,128], index: 5, kind: input, shape index: {}]
  %s6 = inlined_call_operand.vmem [shape: f32[1,128], index: 6, kind: input, shape index: {}]
  %s7 = inlined_call_operand.vmem [shape: f32[1,128], index: 7, kind: input, shape index: {}]
  %s8 = inlined_call_operand.vmem [shape: f32[1,128], index: 8, kind: input, shape index: {}]
  %s9 = inlined_call_operand.vmem [shape: f32[8,128], index: 9, kind: output, shape index: {}]
  %s10 = sld [smem:[#allocation0]]
  $region66: #{mlp_forward.1} parent=0
    _
  %s12 = ssub.s32 1, %s10
  %s13 = scalar_select 0, %s12, %s10
  $region1: #{mlp_forward.1} parent=0
    #allocation2 [shape = 'u8[4096]{0}', space=vmem, size = 0x1000, scoped, tag = 'input window, operand 0, single buffered']
    #allocation3 [shape = 's32[1]{0}', space=sflag, size = 0x4, scoped, tag = 'scoped memory for mlp_forward.1']
    #allocation4 [shape = 'u8[16384]{0}', space=vmem, size = 0x4000, scoped, tag = 'input window, operand 1, single buffered']
    #allocation5 [shape = 's32[1]{0}', space=sflag, size = 0x4, scoped, tag = 'scoped memory for mlp_forward.1']
    #allocation6 [shape = 'u8[32768]{0}', space=vmem, size = 0x8000, scoped, tag = 'input window, operand 2, single buffered']
    #allocation7 [shape = 'u8[32768]{0}', space=vmem, size = 0x8000, scoped, tag = 'input window, operand 3, single buffered']
    #allocation8 [shape = 's32[1]{0}', space=sflag, size = 0x4, scoped, tag = 'scoped memory for mlp_forward.1']
    #allocation9 [shape = 'u8[32768]{0}', space=vmem, size = 0x8000, scoped, tag = 'input window, operand 4, single buffered']
    %14 = vsyncpa [#allocation3], 0
    %15 = vsyncpa [#allocation5], 0
    %16 = vsyncpa [#allocation8], 0
    // Predicated region
    $region2: #{mlp_forward.1} parent=1 // pred_check
      _
    $region3: #{mlp_forward.1} parent=1 // pred_check_branch
      %18 = sbr.rel (0) target = $region5
    $region4: #{mlp_forward.1} parent=1 // pred_region
      %s20 = ssub.s32 128, 128
      %21 = vsyncadd [#allocation3], %s20
      %s23 = sshll.u32 [#allocation2], 4
      %s24 = int_to_ptr.vmem [resolvable:$true] %s23
      %26 = dma.hbm_to_vmem [thread:$0]  %s0, 128, %s24, [#allocation3]
    $region5: #{mlp_forward.1} parent=1 // pred_fallthru
      _
    // Predicated region
    $region6: #{mlp_forward.1} parent=1 // pred_check
      _
    $region7: #{mlp_forward.1} parent=1 // pred_check_branch
      %28 = sbr.rel (0) target = $region9
    $region8: #{mlp_forward.1} parent=1 // pred_region
      %s30 = ssub.s32 512, 512
      %31 = vsyncadd [#allocation5], %s30
      %s32 = sshll.u32 [#allocation4], 4
      %s33 = int_to_ptr.vmem [resolvable:$true] %s32
      %38 = dma.hbm_to_vmem [thread:$0]  %s1, 512, %s33, [#allocation5], 64, 64, 4
    $region9: #{mlp_forward.1} parent=1 // pred_fallthru
      _
    // Predicated region
    $region10: #{mlp_forward.1} parent=1 // pred_check
      _
    $region11: #{mlp_forward.1} parent=1 // pred_check_branch
      %40 = sbr.rel (0) target = $region13
    $region12: #{mlp_forward.1} parent=1 // pred_region
      %s42 = ssub.s32 1024, 1024
      %43 = vsyncadd [#allocation5], %s42
      %s44 = sshll.u32 [#allocation6], 4
      %s45 = int_to_ptr.vmem [resolvable:$true] %s44
      %50 = dma.hbm_to_vmem [thread:$0]  %s2, 1024, %s45, [#allocation5], 64, 64, 4
    $region13: #{mlp_forward.1} parent=1 // pred_fallthru
      _
    // Predicated region
    $region14: #{mlp_forward.1} parent=1 // pred_check
      _
    $region15: #{mlp_forward.1} parent=1 // pred_check_branch
      %52 = sbr.rel (0) target = $region17
    $region16: #{mlp_forward.1} parent=1 // pred_region
      %s54 = ssub.s32 1024, 1024
      %55 = vsyncadd [#allocation8], %s54
      %s56 = sshll.u32 [#allocation7], 4
      %s57 = int_to_ptr.vmem [resolvable:$true] %s56
      %62 = dma.hbm_to_vmem [thread:$0]  %s3, 1024, %s57, [#allocation8], 64, 64, 4
    $region17: #{mlp_forward.1} parent=1 // pred_fallthru
      _
    // Predicated region
    $region18: #{mlp_forward.1} parent=1 // pred_check
      _
    $region19: #{mlp_forward.1} parent=1 // pred_check_branch
      %64 = sbr.rel (0) target = $region21
    $region20: #{mlp_forward.1} parent=1 // pred_region
      %s66 = ssub.s32 1024, 1024
      %67 = vsyncadd [#allocation8], %s66
      %s68 = sshll.u32 [#allocation9], 4
      %s69 = int_to_ptr.vmem [resolvable:$true] %s68
      %74 = dma.hbm_to_vmem [thread:$0]  %s4, 1024, %s69, [#allocation8], 64, 64, 4
    $region21: #{mlp_forward.1} parent=1 // pred_fallthru
      _
    // Predicated region
    $region22: #{mlp_forward.1} parent=1 // pred_check
      _
    $region23: #{mlp_forward.1} parent=1 // pred_check_branch
      %76 = sbr.rel (0) target = $region25
    $region24: #{mlp_forward.1} parent=1 // pred_region
      _
    $region25: #{mlp_forward.1} parent=1 // pred_fallthru
      _
    // Predicated region
    $region26: #{mlp_forward.1} parent=1 // pred_check
      _
    $region27: #{mlp_forward.1} parent=1 // pred_check_branch
      %78 = sbr.rel (0) target = $region29
    $region28: #{mlp_forward.1} parent=1 // pred_region
      _
    $region29: #{mlp_forward.1} parent=1 // pred_fallthru
      _
    // Predicated region
    $region30: #{mlp_forward.1} parent=1 // pred_check
      _
    $region31: #{mlp_forward.1} parent=1 // pred_check_branch
      %80 = sbr.rel (0) target = $region33
    $region32: #{mlp_forward.1} parent=1 // pred_region
      _
    $region33: #{mlp_forward.1} parent=1 // pred_fallthru
      _
    // Predicated region
    $region34: #{mlp_forward.1} parent=1 // pred_check
      _
    $region35: #{mlp_forward.1} parent=1 // pred_check_branch
      %82 = sbr.rel (0) target = $region37
    $region36: #{mlp_forward.1} parent=1 // pred_region
      _
    $region37: #{mlp_forward.1} parent=1 // pred_fallthru
      _
    // Predicated region
    $region38: #{mlp_forward.1} parent=1 // pred_check
      _
    $region39: #{mlp_forward.1} parent=1 // pred_check_branch
      %84 = sbr.rel (0) target = $region41
    $region40: #{mlp_forward.1} parent=1 // pred_region
      %85 = dma.done [#allocation3], 128
    $region41: #{mlp_forward.1} parent=1 // pred_fallthru
      _
    // Predicated region
    $region42: #{mlp_forward.1} parent=1 // pred_check
      _
    $region43: #{mlp_forward.1} parent=1 // pred_check_branch
      %87 = sbr.rel (0) target = $region45
    $region44: #{mlp_forward.1} parent=1 // pred_region
      %88 = dma.done [#allocation5], 512
    $region45: #{mlp_forward.1} parent=1 // pred_fallthru
      _
    // Predicated region
    $region46: #{mlp_forward.1} parent=1 // pred_check
      _
    $region47: #{mlp_forward.1} parent=1 // pred_check_branch
      %90 = sbr.rel (0) target = $region49
    $region48: #{mlp_forward.1} parent=1 // pred_region
      %91 = dma.done [#allocation5], 1024
    $region49: #{mlp_forward.1} parent=1 // pred_fallthru
      _
    // Predicated region
    $region50: #{mlp_forward.1} parent=1 // pred_check
      _
    $region51: #{mlp_forward.1} parent=1 // pred_check_branch
      %93 = sbr.rel (0) target = $region53
    $region52: #{mlp_forward.1} parent=1 // pred_region
      %94 = dma.done [#allocation8], 1024
    $region53: #{mlp_forward.1} parent=1 // pred_fallthru
      _
    // Predicated region
    $region54: #{mlp_forward.1} parent=1 // pred_check
      _
    $region55: #{mlp_forward.1} parent=1 // pred_check_branch
      %96 = sbr.rel (0) target = $region57
    $region56: #{mlp_forward.1} parent=1 // pred_region
      %97 = dma.done [#allocation8], 1024
    $region57: #{mlp_forward.1} parent=1 // pred_fallthru
      _
    %v99 = vld [vmem:[#allocation2] sm:$0xff]
    %v100 = vpack.c.bf16 %v99, %v99
    %v101 = vld [vmem:[#allocation4] sm:$0xf]
    %v102 = vld [vmem:[#allocation4 + $0x4] sm:$0xf]
    %v103 = vld [vmem:[#allocation4 + $0x8] sm:$0xf]
    %v104 = vld [vmem:[#allocation4 + $0xc] sm:$0xf]
    %v105 = vld [vmem:[#allocation4 + $0x10] sm:$0xf]
    %v106 = vld [vmem:[#allocation4 + $0x14] sm:$0xf]
    %v107 = vld [vmem:[#allocation4 + $0x18] sm:$0xf]
    %v108 = vld [vmem:[#allocation4 + $0x1c] sm:$0xf]
    %v109 = vld [vmem:[%s5] sm:$0x1]
    %v111 = vlaneseq
    %v112 = vshrl.u32 %v111, 7
    %v113 = vsub.s32 0, %v112
    %v114 = vrot.slane %v109, %v113
    %v124 = vunpack.c.l.b16 %v101
    %v125 = vunpack.c.l.b16 %v102
    %v126 = vunpack.c.l.b16 %v103
    %v127 = vunpack.c.l.b16 %v104
    %v128 = vunpack.c.l.b16 %v105
    %v129 = vunpack.c.l.b16 %v106
    %v130 = vunpack.c.l.b16 %v107
    %v131 = vunpack.c.l.b16 %v108
    %v132 = vpack.c.b16 %v125, %v124
    %v133 = vpack.c.b16 %v127, %v126
    %v134 = vpack.c.b16 %v129, %v128
    %v135 = vpack.c.b16 %v131, %v130
    %vm140 = vcmask 523264
    %v142 = vsel %vm140, %v100, 0
    %144 = vmatprep.subr.bf16.mxu0 0
    %145 = vmatpush1.bf16.msra.mxu0 %v132
    %146 = vmatprep.subr.bf16.mxu0 0
    %147 = vmatpush1.bf16.msra.mxu0 %v133
    %148 = vmatprep.subr.bf16.mxu0 0
    %149 = vmatpush1.bf16.msra.mxu0 %v134
    %150 = vmatprep.subr.bf16.mxu0 0
    %151 = vmatpush1.bf16.msra.mxu0 %v135
    %152 = vmatprep.subr.bf16.mxu0 0
    %153 = vmatpush1.bf16.msra.mxu0 0
    %154 = vmatprep.subr.bf16.mxu0 0
    %155 = vmatpush1.bf16.msra.mxu0 0
    %156 = vmatprep.subr.bf16.mxu0 0
    %157 = vmatpush1.bf16.msra.mxu0 0
    %158 = vmatprep.subr.bf16.mxu0 0
    %159 = vmatpush1.bf16.msra.mxu0 0
    %160 = vmatprep.subr.bf16.mxu0 0
    %161 = vmatpush1.bf16.msra.mxu0 0
    %162 = vmatprep.subr.bf16.mxu0 0
    %163 = vmatpush1.bf16.msra.mxu0 0
    %164 = vmatprep.subr.bf16.mxu0 0
    %165 = vmatpush1.bf16.msra.mxu0 0
    %166 = vmatprep.subr.bf16.mxu0 0
    %167 = vmatpush1.bf16.msra.mxu0 0
    %168 = vmatprep.subr.bf16.mxu0 0
    %169 = vmatpush1.bf16.msra.mxu0 0
    %170 = vmatprep.subr.bf16.mxu0 0
    %171 = vmatpush1.bf16.msra.mxu0 0
    %172 = vmatprep.subr.bf16.mxu0 0
    %173 = vmatpush1.bf16.msra.mxu0 0
    %174 = vmatprep.subr.bf16.mxu0 0
    %175 = vmatpush1.bf16.msra.mxu0 0
    %176 = vmatprep.mubr.bf16.mxu0 0
    %177 = vmatmul.mubr.bf16.gmra.mrb[0].mxu0 %v142
    %v178 = vpop.f32.mrb[0].mxu0
    %v179 = vadd.f32 %v114, %v178
    %v180 = vpop.f32.mrb[0].mxu0
    %v181 = vpop.f32.mrb[0].mxu0
    %v182 = vpop.f32.mrb[0].mxu0
    %183 = vdwg.mxu0
    %v184 = vmax.f32 %v179, 0.0
    %v185 = vpack.c.bf16 %v184, %v184
    %v186 = vld [vmem:[#allocation6] sm:$0xf]
    %v187 = vld [vmem:[#allocation6 + $0x4] sm:$0xf]
    %v188 = vld [vmem:[#allocation6 + $0x8] sm:$0xf]
    %v189 = vld [vmem:[#allocation6 + $0xc] sm:$0xf]
    %v190 = vld [vmem:[#allocation6 + $0x10] sm:$0xf]
    %v191 = vld [vmem:[#allocation6 + $0x14] sm:$0xf]
    %v192 = vld [vmem:[#allocation6 + $0x18] sm:$0xf]
    %v193 = vld [vmem:[#allocation6 + $0x1c] sm:$0xf]
    %v194 = vld [vmem:[#allocation6 + $0x20] sm:$0xf]
    %v195 = vld [vmem:[#allocation6 + $0x24] sm:$0xf]
    %v196 = vld [vmem:[#allocation6 + $0x28] sm:$0xf]
    %v197 = vld [vmem:[#allocation6 + $0x2c] sm:$0xf]
    %v198 = vld [vmem:[#allocation6 + $0x30] sm:$0xf]
    %v199 = vld [vmem:[#allocation6 + $0x34] sm:$0xf]
    %v200 = vld [vmem:[#allocation6 + $0x38] sm:$0xf]
    %v201 = vld [vmem:[#allocation6 + $0x3c] sm:$0xf]
    %v202 = vld [vmem:[%s6] sm:$0x1]
    %v204 = vlaneseq
    %v205 = vshrl.u32 %v204, 7
    %v206 = vsub.s32 0, %v205
    %v207 = vrot.slane %v202, %v206
    %v225 = vunpack.c.l.b16 %v186
    %v226 = vunpack.c.l.b16 %v187
    %v227 = vunpack.c.l.b16 %v188
    %v228 = vunpack.c.l.b16 %v189
    %v229 = vunpack.c.l.b16 %v190
    %v230 = vunpack.c.l.b16 %v191
    %v231 = vunpack.c.l.b16 %v192
    %v232 = vunpack.c.l.b16 %v193
    %v233 = vunpack.c.l.b16 %v194
    %v234 = vunpack.c.l.b16 %v195
    %v235 = vunpack.c.l.b16 %v196
    %v236 = vunpack.c.l.b16 %v197
    %v237 = vunpack.c.l.b16 %v198
    %v238 = vunpack.c.l.b16 %v199
    %v239 = vunpack.c.l.b16 %v200
    %v240 = vunpack.c.l.b16 %v201
    %v241 = vpack.c.b16 %v226, %v225
    %v242 = vpack.c.b16 %v228, %v227
    %v243 = vpack.c.b16 %v230, %v229
    %v244 = vpack.c.b16 %v232, %v231
    %v245 = vpack.c.b16 %v234, %v233
    %v246 = vpack.c.b16 %v236, %v235
    %v247 = vpack.c.b16 %v238, %v237
    %v248 = vpack.c.b16 %v240, %v239
    %257 = vmatprep.subr.bf16.mxu0 0
    %258 = vmatpush1.bf16.msra.mxu0 %v241
    %259 = vmatprep.subr.bf16.mxu0 0
    %260 = vmatpush1.bf16.msra.mxu0 %v242
    %261 = vmatprep.subr.bf16.mxu0 0
    %262 = vmatpush1.bf16.msra.mxu0 %v243
    %263 = vmatprep.subr.bf16.mxu0 0
    %264 = vmatpush1.bf16.msra.mxu0 %v244
    %265 = vmatprep.subr.bf16.mxu0 0
    %266 = vmatpush1.bf16.msra.mxu0 %v245
    %267 = vmatprep.subr.bf16.mxu0 0
    %268 = vmatpush1.bf16.msra.mxu0 %v246
    %269 = vmatprep.subr.bf16.mxu0 0
    %270 = vmatpush1.bf16.msra.mxu0 %v247
    %271 = vmatprep.subr.bf16.mxu0 0
    %272 = vmatpush1.bf16.msra.mxu0 %v248
    %273 = vmatprep.subr.bf16.mxu0 0
    %274 = vmatpush1.bf16.msra.mxu0 0
    %275 = vmatprep.subr.bf16.mxu0 0
    %276 = vmatpush1.bf16.msra.mxu0 0
    %277 = vmatprep.subr.bf16.mxu0 0
    %278 = vmatpush1.bf16.msra.mxu0 0
    %279 = vmatprep.subr.bf16.mxu0 0
    %280 = vmatpush1.bf16.msra.mxu0 0
    %281 = vmatprep.subr.bf16.mxu0 0
    %282 = vmatpush1.bf16.msra.mxu0 0
    %283 = vmatprep.subr.bf16.mxu0 0
    %284 = vmatpush1.bf16.msra.mxu0 0
    %285 = vmatprep.subr.bf16.mxu0 0
    %286 = vmatpush1.bf16.msra.mxu0 0
    %287 = vmatprep.subr.bf16.mxu0 0
    %288 = vmatpush1.bf16.msra.mxu0 0
    %289 = vmatprep.mubr.bf16.mxu0 0
    %290 = vmatmul.mubr.bf16.gmra.mrb[0].mxu0 %v185
    %v291 = vpop.f32.mrb[0].mxu0
    %v292 = vadd.f32 %v207, %v291
    %v293 = vpop.f32.mrb[0].mxu0
    %v294 = vpop.f32.mrb[0].mxu0
    %v295 = vpop.f32.mrb[0].mxu0
    %296 = vdwg.mxu0
    %v297 = vmax.f32 %v292, 0.0
    %v298 = vpack.c.bf16 %v297, %v297
    %v299 = vld [vmem:[#allocation7] sm:$0xf]
    %v300 = vld [vmem:[#allocation7 + $0x4] sm:$0xf]
    %v301 = vld [vmem:[#allocation7 + $0x8] sm:$0xf]
    %v302 = vld [vmem:[#allocation7 + $0xc] sm:$0xf]
    %v303 = vld [vmem:[#allocation7 + $0x10] sm:$0xf]
    %v304 = vld [vmem:[#allocation7 + $0x14] sm:$0xf]
    %v305 = vld [vmem:[#allocation7 + $0x18] sm:$0xf]
    %v306 = vld [vmem:[#allocation7 + $0x1c] sm:$0xf]
    %v307 = vld [vmem:[#allocation7 + $0x20] sm:$0xf]
    %v308 = vld [vmem:[#allocation7 + $0x24] sm:$0xf]
    %v309 = vld [vmem:[#allocation7 + $0x28] sm:$0xf]
    %v310 = vld [vmem:[#allocation7 + $0x2c] sm:$0xf]
    %v311 = vld [vmem:[#allocation7 + $0x30] sm:$0xf]
    %v312 = vld [vmem:[#allocation7 + $0x34] sm:$0xf]
    %v313 = vld [vmem:[#allocation7 + $0x38] sm:$0xf]
    %v314 = vld [vmem:[#allocation7 + $0x3c] sm:$0xf]
    %v315 = vld [vmem:[%s7] sm:$0x1]
    %v317 = vlaneseq
    %v318 = vshrl.u32 %v317, 7
    %v319 = vsub.s32 0, %v318
    %v320 = vrot.slane %v315, %v319
    %v338 = vunpack.c.l.b16 %v299
    %v339 = vunpack.c.l.b16 %v300
    %v340 = vunpack.c.l.b16 %v301
    %v341 = vunpack.c.l.b16 %v302
    %v342 = vunpack.c.l.b16 %v303
    %v343 = vunpack.c.l.b16 %v304
    %v344 = vunpack.c.l.b16 %v305
    %v345 = vunpack.c.l.b16 %v306
    %v346 = vunpack.c.l.b16 %v307
    %v347 = vunpack.c.l.b16 %v308
    %v348 = vunpack.c.l.b16 %v309
    %v349 = vunpack.c.l.b16 %v310
    %v350 = vunpack.c.l.b16 %v311
    %v351 = vunpack.c.l.b16 %v312
    %v352 = vunpack.c.l.b16 %v313
    %v353 = vunpack.c.l.b16 %v314
    %v354 = vpack.c.b16 %v339, %v338
    %v355 = vpack.c.b16 %v341, %v340
    %v356 = vpack.c.b16 %v343, %v342
    %v357 = vpack.c.b16 %v345, %v344
    %v358 = vpack.c.b16 %v347, %v346
    %v359 = vpack.c.b16 %v349, %v348
    %v360 = vpack.c.b16 %v351, %v350
    %v361 = vpack.c.b16 %v353, %v352
    %370 = vmatprep.subr.bf16.mxu0 0
    %371 = vmatpush1.bf16.msra.mxu0 %v354
    %372 = vmatprep.subr.bf16.mxu0 0
    %373 = vmatpush1.bf16.msra.mxu0 %v355
    %374 = vmatprep.subr.bf16.mxu0 0
    %375 = vmatpush1.bf16.msra.mxu0 %v356
    %376 = vmatprep.subr.bf16.mxu0 0
    %377 = vmatpush1.bf16.msra.mxu0 %v357
    %378 = vmatprep.subr.bf16.mxu0 0
    %379 = vmatpush1.bf16.msra.mxu0 %v358
    %380 = vmatprep.subr.bf16.mxu0 0
    %381 = vmatpush1.bf16.msra.mxu0 %v359
    %382 = vmatprep.subr.bf16.mxu0 0
    %383 = vmatpush1.bf16.msra.mxu0 %v360
    %384 = vmatprep.subr.bf16.mxu0 0
    %385 = vmatpush1.bf16.msra.mxu0 %v361
    %386 = vmatprep.subr.bf16.mxu0 0
    %387 = vmatpush1.bf16.msra.mxu0 0
    %388 = vmatprep.subr.bf16.mxu0 0
    %389 = vmatpush1.bf16.msra.mxu0 0
    %390 = vmatprep.subr.bf16.mxu0 0
    %391 = vmatpush1.bf16.msra.mxu0 0
    %392 = vmatprep.subr.bf16.mxu0 0
    %393 = vmatpush1.bf16.msra.mxu0 0
    %394 = vmatprep.subr.bf16.mxu0 0
    %395 = vmatpush1.bf16.msra.mxu0 0
    %396 = vmatprep.subr.bf16.mxu0 0
    %397 = vmatpush1.bf16.msra.mxu0 0
    %398 = vmatprep.subr.bf16.mxu0 0
    %399 = vmatpush1.bf16.msra.mxu0 0
    %400 = vmatprep.subr.bf16.mxu0 0
    %401 = vmatpush1.bf16.msra.mxu0 0
    %402 = vmatprep.mubr.bf16.mxu0 0
    %403 = vmatmul.mubr.bf16.gmra.mrb[0].mxu0 %v298
    %v404 = vpop.f32.mrb[0].mxu0
    %v405 = vadd.f32 %v320, %v404
    %v406 = vpop.f32.mrb[0].mxu0
    %v407 = vpop.f32.mrb[0].mxu0
    %v408 = vpop.f32.mrb[0].mxu0
    %409 = vdwg.mxu0
    %v410 = vmax.f32 %v405, 0.0
    %v411 = vpack.c.bf16 %v410, %v410
    %v412 = vld [vmem:[#allocation9] sm:$0xf]
    %v413 = vld [vmem:[#allocation9 + $0x4] sm:$0xf]
    %v414 = vld [vmem:[#allocation9 + $0x8] sm:$0xf]
    %v415 = vld [vmem:[#allocation9 + $0xc] sm:$0xf]
    %v416 = vld [vmem:[#allocation9 + $0x10] sm:$0xf]
    %v417 = vld [vmem:[#allocation9 + $0x14] sm:$0xf]
    %v418 = vld [vmem:[#allocation9 + $0x18] sm:$0xf]
    %v419 = vld [vmem:[#allocation9 + $0x1c] sm:$0xf]
    %v420 = vld [vmem:[#allocation9 + $0x20] sm:$0xf]
    %v421 = vld [vmem:[#allocation9 + $0x24] sm:$0xf]
    %v422 = vld [vmem:[#allocation9 + $0x28] sm:$0xf]
    %v423 = vld [vmem:[#allocation9 + $0x2c] sm:$0xf]
    %v424 = vld [vmem:[#allocation9 + $0x30] sm:$0xf]
    %v425 = vld [vmem:[#allocation9 + $0x34] sm:$0xf]
    %v426 = vld [vmem:[#allocation9 + $0x38] sm:$0xf]
    %v427 = vld [vmem:[#allocation9 + $0x3c] sm:$0xf]
    %v428 = vld [vmem:[%s8] sm:$0x1]
    %v430 = vlaneseq
    %v431 = vshrl.u32 %v430, 7
    %v432 = vsub.s32 0, %v431
    %v433 = vrot.slane %v428, %v432
    %v451 = vunpack.c.l.b16 %v412
    %v452 = vunpack.c.l.b16 %v413
    %v453 = vunpack.c.l.b16 %v414
    %v454 = vunpack.c.l.b16 %v415
    %v455 = vunpack.c.l.b16 %v416
    %v456 = vunpack.c.l.b16 %v417
    %v457 = vunpack.c.l.b16 %v418
    %v458 = vunpack.c.l.b16 %v419
    %v459 = vunpack.c.l.b16 %v420
    %v460 = vunpack.c.l.b16 %v421
    %v461 = vunpack.c.l.b16 %v422
    %v462 = vunpack.c.l.b16 %v423
    %v463 = vunpack.c.l.b16 %v424
    %v464 = vunpack.c.l.b16 %v425
    %v465 = vunpack.c.l.b16 %v426
    %v466 = vunpack.c.l.b16 %v427
    %v467 = vpack.c.b16 %v452, %v451
    %v468 = vpack.c.b16 %v454, %v453
    %v469 = vpack.c.b16 %v456, %v455
    %v470 = vpack.c.b16 %v458, %v457
    %v471 = vpack.c.b16 %v460, %v459
    %v472 = vpack.c.b16 %v462, %v461
    %v473 = vpack.c.b16 %v464, %v463
    %v474 = vpack.c.b16 %v466, %v465
    %483 = vmatprep.subr.bf16.mxu0 0
    %484 = vmatpush1.bf16.msra.mxu0 %v467
    %485 = vmatprep.subr.bf16.mxu0 0
    %486 = vmatpush1.bf16.msra.mxu0 %v468
    %487 = vmatprep.subr.bf16.mxu0 0
    %488 = vmatpush1.bf16.msra.mxu0 %v469
    %489 = vmatprep.subr.bf16.mxu0 0
    %490 = vmatpush1.bf16.msra.mxu0 %v470
    %491 = vmatprep.subr.bf16.mxu0 0
    %492 = vmatpush1.bf16.msra.mxu0 %v471
    %493 = vmatprep.subr.bf16.mxu0 0
    %494 = vmatpush1.bf16.msra.mxu0 %v472
    %495 = vmatprep.subr.bf16.mxu0 0
    %496 = vmatpush1.bf16.msra.mxu0 %v473
    %497 = vmatprep.subr.bf16.mxu0 0
    %498 = vmatpush1.bf16.msra.mxu0 %v474
    %499 = vmatprep.subr.bf16.mxu0 0
    %500 = vmatpush1.bf16.msra.mxu0 0
    %501 = vmatprep.subr.bf16.mxu0 0
    %502 = vmatpush1.bf16.msra.mxu0 0
    %503 = vmatprep.subr.bf16.mxu0 0
    %504 = vmatpush1.bf16.msra.mxu0 0
    %505 = vmatprep.subr.bf16.mxu0 0
    %506 = vmatpush1.bf16.msra.mxu0 0
    %507 = vmatprep.subr.bf16.mxu0 0
    %508 = vmatpush1.bf16.msra.mxu0 0
    %509 = vmatprep.subr.bf16.mxu0 0
    %510 = vmatpush1.bf16.msra.mxu0 0
    %511 = vmatprep.subr.bf16.mxu0 0
    %512 = vmatpush1.bf16.msra.mxu0 0
    %513 = vmatprep.subr.bf16.mxu0 0
    %514 = vmatpush1.bf16.msra.mxu0 0
    %515 = vmatprep.mubr.bf16.mxu0 0
    %516 = vmatmul.mubr.bf16.gmra.mrb[0].mxu0 %v411
    %v517 = vpop.f32.mrb[0].mxu0
    %v518 = vadd.f32 %v433, %v517
    %v519 = vpop.f32.mrb[0].mxu0
    %v520 = vpop.f32.mrb[0].mxu0
    %v521 = vpop.f32.mrb[0].mxu0
    %522 = vdwg.mxu0
    %v523 = vmul.f32 %v518, 0.5
    %v524 = vtanh.pop %v523
    %v525 = vadd.f32 %v524, 1.0
    %v526 = vmul.f32 %v525, 0.5
    %527 = vst [vmem:[%s9] sm:$0xff] %v526
    // Predicated region
    $region58: #{mlp_forward.1} parent=1 // pred_check
      _
    $region59: #{mlp_forward.1} parent=1 // pred_check_branch
      %529 = sbr.rel (0) target = $region61
    $region60: #{mlp_forward.1} parent=1 // pred_region
      _
    $region61: #{mlp_forward.1} parent=1 // pred_fallthru
      _
    // Predicated region
    $region62: #{mlp_forward.1} parent=1 // pred_check
      _
    $region63: #{mlp_forward.1} parent=1 // pred_check_branch
      %531 = sbr.rel (0) target = $region65
    $region64: #{mlp_forward.1} parent=1 // pred_region
      _
    $region65: #{mlp_forward.1} parent=1 // pred_fallthru
      _
    %532 = vsyncpa [#allocation3], 1
    %533 = vsyncpa [#allocation5], 1
    %534 = vsyncpa [#allocation8], 1

</llo_original>
